<compile_context>
chip_gen: v6e
topology: v6e:2x2x1
jax: 0.10.0
libtpu: 0.0.40
codegen_flags: <defaults>
</compile_context>

<pallas_src>
import math

import jax
import jax.numpy as jnp
from jax.experimental import pallas as pl
from jax.experimental.pallas import tpu as pltpu


def _round_up(x, m):
    return (x + m - 1) // m * m


def _linear_kernel(x_ref, w_ref, b_ref, o_ref):
    # x_ref: [TB, D_in_pad]        input dtype (f32/bf16), streamed per grid step
    # w_ref: [D_in_pad, D_out_pad] bf16, resident (single-buffered) across the grid
    # b_ref: [1, D_out_pad]        f32,  resident (single-buffered) across the grid
    # o_ref: [TB, D_out_pad]       bf16, lane-dense stores
    x = x_ref[...].astype(jnp.bfloat16)  # VPU cast, hidden under the DMA
    acc = jnp.dot(x, w_ref[...], preferred_element_type=jnp.float32)  # MXU
    o_ref[...] = (acc + b_ref[...]).astype(o_ref.dtype)


def prepare_linear_params(weight, bias):
    """One-time parameter prep (hoisted out of the per-call hot path).

    weight: [D_out, D_in] (PyTorch nn.Linear layout), bias: [D_out]
    returns w_p: [D_in_pad, D_out_pad] bf16, b_p: [1, D_out_pad] f32,
    both zero-padded so padded output columns are exactly 0.
    """
    d_out, d_in = weight.shape
    d_in_pad = _round_up(d_in, 128)
    d_out_pad = _round_up(d_out, 128)
    w_p = jnp.zeros((d_in_pad, d_out_pad), jnp.bfloat16)
    w_p = w_p.at[:d_in, :d_out].set(weight.T.astype(jnp.bfloat16))
    b_p = jnp.zeros((1, d_out_pad), jnp.float32)
    b_p = b_p.at[0, :d_out].set(bias.astype(jnp.float32))
    return w_p, b_p


def logistic_regression_forward(x, w_p, b_p, *, d_out, block_b=1024,
                                vmem_budget_bytes=40 << 20):
    """Forward pass of LogisticRegression: flatten + Linear.

    x:   [B, ...]  (trailing dims flattened like torch .view(B, -1))
    w_p, b_p: prepared params from prepare_linear_params()
    returns [B, d_out] float32
    """
    B = x.shape[0]
    x2d = x.reshape(B, -1)
    d_in = x2d.shape[1]
    d_in_pad, d_out_pad = w_p.shape

    if d_in != d_in_pad:
        # Fallback only when D_in is not a multiple of 128: pad the contraction
        # dim with zero columns (extra copy, off the fast path).
        xp = jnp.zeros((B, d_in_pad), x2d.dtype)
        x2d = xp.at[:, :d_in].set(x2d)

    x_itemsize = jnp.dtype(x2d.dtype).itemsize

    # --- batch tile from an explicit VMEM budget (v7x: 64 MiB physical) ---
    TB = min(block_b, _round_up(B, 8))
    per_row = 2 * d_in_pad * x_itemsize + 2 * d_out_pad * 2   # x + out, double-buffered
    resident = d_in_pad * d_out_pad * 2 + d_out_pad * 4       # weight (1 buffer) + bias
    while TB > 8 and TB * per_row + resident > vmem_budget_bytes:
        TB = max(8, _round_up(TB // 2, 8))

    # Ragged last tile handled by Pallas: no batch padding, no wasted DMA/MXU work.
    grid = (pl.cdiv(B, TB),)

    cost = pl.CostEstimate(
        flops=2 * B * d_in_pad * d_out_pad,
        transcendentals=0,
        bytes_accessed=(B * d_in_pad * x_itemsize
                        + w_p.size * 2 + b_p.size * 4
                        + B * d_out_pad * 2),
    )

    out = pl.pallas_call(
        _linear_kernel,
        out_shape=jax.ShapeDtypeStruct((B, d_out_pad), jnp.bfloat16),
        grid_spec=pltpu.PrefetchScalarGridSpec(
            num_scalar_prefetch=0,
            grid=grid,
            in_specs=[
                # x: one batch tile per grid step (default double buffering).
                pl.BlockSpec((TB, d_in_pad), lambda i: (i, 0)),
                # weight / bias: constant index_map -> stay resident in VMEM;
                # a single buffer (double-buffering them only burns VMEM).
                pl.BlockSpec((d_in_pad, d_out_pad), lambda i: (0, 0),
                             pipeline_mode=pl.Buffered(1)),
                pl.BlockSpec((1, d_out_pad), lambda i: (0, 0),
                             pipeline_mode=pl.Buffered(1)),
            ],
            out_specs=pl.BlockSpec((TB, d_out_pad), lambda i: (i, 0)),
        ),
        compiler_params=pltpu.CompilerParams(
            # Batch tiles are independent: lets v7x's 2 TensorCores split the
            # batch grid (no-op on single-TC v5e/v6e).
            # TODO(synk): if profiling shows a single-TC run on v7x, switch to
            # pltpu.CORE_PARALLEL / pl.core_map over a TensorCore mesh.
            dimension_semantics=("parallel",),
            # Raise the scoped VMEM limit (v5e default 16 MiB) so the budgeted
            # tile is not rejected; stays within v7x's 64 MiB physical VMEM.
            vmem_limit_bytes=64 << 20,
        ),
        cost_estimate=cost,
    )(x2d, w_p, b_p)

    # Slice off the lane padding; return f32 like nn.Linear. Downstream code
    # that can consume the padded bf16 [B, 128] block directly should skip
    # this slice to save an extra HBM pass.
    return out[:, :d_out].astype(jnp.float32)


def init_linear_params(key, input_dim, output_dim):
    # Deterministic init matching nn.Linear default: U(-1/sqrt(fan_in), 1/sqrt(fan_in))
    kw, kb = jax.random.split(key)
    bound = 1.0 / math.sqrt(input_dim)
    weight = jax.random.uniform(
        kw, (output_dim, input_dim), minval=-bound, maxval=bound, dtype=jnp.float32
    )
    bias = jax.random.uniform(
        kb, (output_dim,), minval=-bound, maxval=bound, dtype=jnp.float32
    )
    return weight, bias


if __name__ == "__main__":
    key = jax.random.PRNGKey(0)
    k_x, k_p = jax.random.split(key)

    # Small NCHW input, consistent with "flatten then linear" forward.
    # NOTE: at B=2 the kernel is launch-overhead dominated; the tiling only
    # pays off at realistic batch sizes (>= 256), but semantics are identical.
    B, C, H, W = 2, 4, 16, 16
    input_dim = C * H * W          # 1024 (multiple of 128 -> no x copy in wrapper)
    output_dim = 10

    x = jax.random.normal(k_x, (B, C, H, W), dtype=jnp.float32)
    weight, bias = init_linear_params(k_p, input_dim, output_dim)

    # One-time parameter prep, hoisted out of the per-call path.
    w_p, b_p = prepare_linear_params(weight, bias)

    fwd = jax.jit(logistic_regression_forward,
                  static_argnames=("d_out", "block_b", "vmem_budget_bytes"))
    out = jax.block_until_ready(fwd(x, w_p, b_p, d_out=output_dim))

    # Sanity check against plain JAX f32 reference (bf16 streaming -> ~1e-2 tol).
    ref = x.reshape(B, -1) @ weight.T + bias
    assert out.shape == (B, output_dim)
    assert out.dtype == jnp.float32
    err = float(jnp.max(jnp.abs(out - ref)))
    assert jnp.allclose(out, ref, atol=3e-2, rtol=3e-2), err

    print("KERNEL_OK")
</pallas_src>

<mosaic_0001>
module attributes {stable_mosaic.version = 11 : i64} {
  func.func @_linear_kernel(%arg0: i32, %arg1: memref<8x1024xf32, #tpu.memory_space<vmem>>, %arg2: memref<1024x128xbf16, #tpu.memory_space<vmem>>, %arg3: memref<1x128xf32, #tpu.memory_space<vmem>>, %arg4: memref<8x128xbf16, #tpu.memory_space<vmem>>) attributes {dimension_semantics = [#tpu.dimension_semantics<parallel>], iteration_bounds = array<i64: 1>, scalar_prefetch = 0 : i64, scratch_operands = 0 : i64, tpu.core_type = #tpu.core_type<tc>, window_params = [{transform_indices = @transform_0, window_bounds = array<i64: 8, 1024>}, {pipeline_mode = #tpu.pipeline_mode<synchronous>, transform_indices = @transform_1, window_bounds = array<i64: 1024, 128>}, {pipeline_mode = #tpu.pipeline_mode<synchronous>, transform_indices = @transform_2, window_bounds = array<i64: 1, 128>}, {transform_indices = @transform_3, window_bounds = array<i64: 8, 128>}]} {
    %c0 = arith.constant 0 : index
    %c0_0 = arith.constant 0 : index
    %0 = vector.load %arg1[%c0, %c0_0] : memref<8x1024xf32, #tpu.memory_space<vmem>>, vector<8x1024xf32>
    %1 = arith.truncf %0 : vector<8x1024xf32> to vector<8x1024xbf16>
    %c0_1 = arith.constant 0 : index
    %c0_2 = arith.constant 0 : index
    %2 = vector.load %arg2[%c0_1, %c0_2] : memref<1024x128xbf16, #tpu.memory_space<vmem>>, vector<1024x128xbf16>
    %cst = arith.constant dense<0.000000e+00> : vector<8x128xf32>
    %3 = tpu.matmul %1, %2, %cst {dimension_numbers = #tpu.dot_dimension_numbers<[1], [0], [0], [1], [0, 0, 1, 1], [], []>} : vector<8x1024xbf16>, vector<1024x128xbf16>, vector<8x128xf32> -> vector<8x128xf32>
    %c0_3 = arith.constant 0 : index
    %c0_4 = arith.constant 0 : index
    %4 = vector.load %arg3[%c0_3, %c0_4] : memref<1x128xf32, #tpu.memory_space<vmem>>, vector<1x128xf32>
    %5 = vector.broadcast %4 : vector<1x128xf32> to vector<8x128xf32>
    %6 = arith.addf %3, %5 : vector<8x128xf32>
    %7 = arith.truncf %6 : vector<8x128xf32> to vector<8x128xbf16>
    %c0_5 = arith.constant 0 : index
    %c0_6 = arith.constant 0 : index
    %8 = vector.load %arg4[%c0_5, %c0_6] : memref<8x128xbf16, #tpu.memory_space<vmem>>, vector<8x128xbf16>
    tpu.vector_store %arg4[%c0_5, %c0_6], %7 {strides = array<i32>} : memref<8x128xbf16, #tpu.memory_space<vmem>>, vector<8x128xbf16>,
    return
  }
  func.func @transform_0(%arg0: i32) -> (i32, i32) {
    %c0_i32 = arith.constant 0 : i32
    %c0_i32_0 = arith.constant 0 : i32
    return %arg0, %c0_i32 : i32, i32
  }
  func.func @transform_1(%arg0: i32) -> (i32, i32) {
    %c0_i32 = arith.constant 0 : i32
    %c0_i32_0 = arith.constant 0 : i32
    %c0_i32_1 = arith.constant 0 : i32
    return %c0_i32, %c0_i32_0 : i32, i32
  }
  func.func @transform_2(%arg0: i32) -> (i32, i32) {
    %c0_i32 = arith.constant 0 : i32
    %c0_i32_0 = arith.constant 0 : i32
    %c0_i32_1 = arith.constant 0 : i32
    return %c0_i32, %c0_i32_0 : i32, i32
  }
  func.func @transform_3(%arg0: i32) -> (i32, i32) {
    %c0_i32 = arith.constant 0 : i32
    %c0_i32_0 = arith.constant 0 : i32
    return %arg0, %c0_i32 : i32, i32
  }
}

</mosaic_0001>

<llo_original>
// kernel: logistic_regression_forward.1
$region0: #{logistic_regression_forward.1}
  #allocation0 [shape = 'u32[]', space=smem, size = 0x4, offset = 0x4, fixed_abs, tag = 'smem constant byte address 0x4 - core index']
  #allocation1 [shape = 'u32[144,128]{1,0:T(1,128)}', space=vmem, size = 0x12000, scoped, tag = 'internal scratch']
  %s0 = inlined_call_operand.vmem [shape: f32[2,1024], index: 0, kind: input, shape index: {}]
  %s1 = inlined_call_operand.hbm [shape: bf16[1024,128], index: 1, kind: input, shape index: {}]
  %s2 = inlined_call_operand.vmem [shape: f32[1,128], index: 2, kind: input, shape index: {}]
  %s3 = inlined_call_operand.vmem [shape: bf16[2,128], index: 3, kind: output, shape index: {}]
  %s4 = sld [smem:[#allocation0]]
  $region56: #{logistic_regression_forward.1} parent=0
    _
  %s6 = ssub.s32 1, %s4
  %s7 = scalar_select 0, %s6, %s4
  $region1: #{logistic_regression_forward.1} parent=0
    #allocation2 [shape = 'u8[262144]{0}', space=vmem, size = 0x40000, scoped, tag = 'input window, operand 1, single buffered']
    #allocation3 [shape = 's32[1]{0}', space=sflag, size = 0x4, scoped, tag = 'scoped memory for logistic_regression_forward.1']
    #allocation4 [shape = 'u8[2048]{0}', space=vmem, size = 0x800, scoped, tag = 'output window, operand 0, single buffered']
    %8 = vsyncpa [#allocation3], 0
    // Predicated region
    $region2: #{logistic_regression_forward.1} parent=1 // pred_check
      _
    $region3: #{logistic_regression_forward.1} parent=1 // pred_check_branch
      %10 = sbr.rel (0) target = $region5
    $region4: #{logistic_regression_forward.1} parent=1 // pred_region
      _
    $region5: #{logistic_regression_forward.1} parent=1 // pred_fallthru
      _
    // Predicated region
    $region6: #{logistic_regression_forward.1} parent=1 // pred_check
      _
    $region7: #{logistic_regression_forward.1} parent=1 // pred_check_branch
      %12 = sbr.rel (0) target = $region9
    $region8: #{logistic_regression_forward.1} parent=1 // pred_region
      %s14 = ssub.s32 8192, 8192
      %15 = vsyncadd [#allocation3], %s14
      %s16 = sshll.u32 [#allocation2], 4
      %s17 = int_to_ptr.vmem [resolvable:$true] %s16
      %22 = dma.hbm_to_vmem [thread:$0]  %s1, 8192, %s17, [#allocation3], 64, 64, 4
    $region9: #{logistic_regression_forward.1} parent=1 // pred_fallthru
      _
    // Predicated region
    $region10: #{logistic_regression_forward.1} parent=1 // pred_check
      _
    $region11: #{logistic_regression_forward.1} parent=1 // pred_check_branch
      %24 = sbr.rel (0) target = $region13
    $region12: #{logistic_regression_forward.1} parent=1 // pred_region
      _
    $region13: #{logistic_regression_forward.1} parent=1 // pred_fallthru
      _
    // Predicated region
    $region14: #{logistic_regression_forward.1} parent=1 // pred_check
      _
    $region15: #{logistic_regression_forward.1} parent=1 // pred_check_branch
      %26 = sbr.rel (0) target = $region17
    $region16: #{logistic_regression_forward.1} parent=1 // pred_region
      %27 = dma.done [#allocation3], 8192
    $region17: #{logistic_regression_forward.1} parent=1 // pred_fallthru
      _
    %v29 = vld [vmem:[%s0] sm:$0xff]
    %v30 = vld [vmem:[%s0 + $0x8] sm:$0xff]
    %v31 = vld [vmem:[%s0 + $0x10] sm:$0xff]
    %v32 = vld [vmem:[%s0 + $0x18] sm:$0xff]
    %v33 = vld [vmem:[%s0 + $0x20] sm:$0xff]
    %v34 = vld [vmem:[%s0 + $0x28] sm:$0xff]
    %v35 = vld [vmem:[%s0 + $0x30] sm:$0xff]
    %v36 = vld [vmem:[%s0 + $0x38] sm:$0xff]
    %v45 = vcombine.low %v29, %v31
    %v46 = vcombine.high %v29, %v31
    %v47 = vcombine.low %v33, %v35
    %v48 = vcombine.high %v33, %v35
    %v50 = vunpack.c.l.s4 1983009808
    %v51 = vunpack.c.0.s8 %v50
    %v52 = vlaneseq
    %v53 = vshrl.u32 %v52, 7
    %v54 = vsub.s32 %v51, %v53
    %v55 = vrot.slane %v45, %v54
    %v57 = vunpack.c.l.s4 1983009808
    %v58 = vunpack.c.0.s8 %v57
    %v59 = vlaneseq
    %v60 = vshrl.u32 %v59, 7
    %v61 = vsub.s32 %v58, %v60
    %v62 = vrot.slane %v46, %v61
    %v64 = vunpack.c.l.s4 1983009808
    %v65 = vunpack.c.0.s8 %v64
    %v66 = vlaneseq
    %v67 = vshrl.u32 %v66, 7
    %v68 = vsub.s32 %v65, %v67
    %v69 = vrot.slane %v47, %v68
    %v71 = vunpack.c.l.s4 1983009808
    %v72 = vunpack.c.0.s8 %v71
    %v73 = vlaneseq
    %v74 = vshrl.u32 %v73, 7
    %v75 = vsub.s32 %v72, %v74
    %v76 = vrot.slane %v48, %v75
    %v77 = vcombine.low %v55, %v69
    %v78 = vcombine.high %v55, %v69
    %v79 = vcombine.low %v62, %v76
    %v80 = vcombine.high %v62, %v76
    %v81 = vcombine.low %v30, %v32
    %v82 = vcombine.high %v30, %v32
    %v83 = vcombine.low %v34, %v36
    %v84 = vcombine.high %v34, %v36
    %v86 = vunpack.c.l.s4 1983009808
    %v87 = vunpack.c.0.s8 %v86
    %v88 = vlaneseq
    %v89 = vshrl.u32 %v88, 7
    %v90 = vsub.s32 %v87, %v89
    %v91 = vrot.slane %v81, %v90
    %v93 = vunpack.c.l.s4 1983009808
    %v94 = vunpack.c.0.s8 %v93
    %v95 = vlaneseq
    %v96 = vshrl.u32 %v95, 7
    %v97 = vsub.s32 %v94, %v96
    %v98 = vrot.slane %v82, %v97
    %v100 = vunpack.c.l.s4 1983009808
    %v101 = vunpack.c.0.s8 %v100
    %v102 = vlaneseq
    %v103 = vshrl.u32 %v102, 7
    %v104 = vsub.s32 %v101, %v103
    %v105 = vrot.slane %v83, %v104
    %v107 = vunpack.c.l.s4 1983009808
    %v108 = vunpack.c.0.s8 %v107
    %v109 = vlaneseq
    %v110 = vshrl.u32 %v109, 7
    %v111 = vsub.s32 %v108, %v110
    %v112 = vrot.slane %v84, %v111
    %v113 = vcombine.low %v91, %v105
    %v114 = vcombine.high %v91, %v105
    %v115 = vcombine.low %v98, %v112
    %v116 = vcombine.high %v98, %v112
    %v125 = vpack.c.bf16 %v77, %v77
    %v126 = vpack.c.bf16 %v78, %v78
    %v127 = vpack.c.bf16 %v79, %v79
    %v128 = vpack.c.bf16 %v80, %v80
    %v129 = vpack.c.bf16 %v113, %v113
    %v130 = vpack.c.bf16 %v114, %v114
    %v131 = vpack.c.bf16 %v115, %v115
    %v132 = vpack.c.bf16 %v116, %v116
    %v133 = vld [vmem:[#allocation2] sm:$0xf]
    %v134 = vld [vmem:[#allocation2 + $0x4] sm:$0xf]
    %v135 = vld [vmem:[#allocation2 + $0x8] sm:$0xf]
    %v136 = vld [vmem:[#allocation2 + $0xc] sm:$0xf]
    %v137 = vld [vmem:[#allocation2 + $0x10] sm:$0xf]
    %v138 = vld [vmem:[#allocation2 + $0x14] sm:$0xf]
    %v139 = vld [vmem:[#allocation2 + $0x18] sm:$0xf]
    %v140 = vld [vmem:[#allocation2 + $0x1c] sm:$0xf]
    %v141 = vld [vmem:[#allocation2 + $0x20] sm:$0xf]
    %v142 = vld [vmem:[#allocation2 + $0x24] sm:$0xf]
    %v143 = vld [vmem:[#allocation2 + $0x28] sm:$0xf]
    %v144 = vld [vmem:[#allocation2 + $0x2c] sm:$0xf]
    %v145 = vld [vmem:[#allocation2 + $0x30] sm:$0xf]
    %v146 = vld [vmem:[#allocation2 + $0x34] sm:$0xf]
    %v147 = vld [vmem:[#allocation2 + $0x38] sm:$0xf]
    %v148 = vld [vmem:[#allocation2 + $0x3c] sm:$0xf]
    %v149 = vld [vmem:[#allocation2 + $0x40] sm:$0xf]
    %v150 = vld [vmem:[#allocation2 + $0x44] sm:$0xf]
    %v151 = vld [vmem:[#allocation2 + $0x48] sm:$0xf]
    %v152 = vld [vmem:[#allocation2 + $0x4c] sm:$0xf]
    %v153 = vld [vmem:[#allocation2 + $0x50] sm:$0xf]
    %v154 = vld [vmem:[#allocation2 + $0x54] sm:$0xf]
    %v155 = vld [vmem:[#allocation2 + $0x58] sm:$0xf]
    %v156 = vld [vmem:[#allocation2 + $0x5c] sm:$0xf]
    %v157 = vld [vmem:[#allocation2 + $0x60] sm:$0xf]
    %v158 = vld [vmem:[#allocation2 + $0x64] sm:$0xf]
    %v159 = vld [vmem:[#allocation2 + $0x68] sm:$0xf]
    %v160 = vld [vmem:[#allocation2 + $0x6c] sm:$0xf]
    %v161 = vld [vmem:[#allocation2 + $0x70] sm:$0xf]
    %v162 = vld [vmem:[#allocation2 + $0x74] sm:$0xf]
    %v163 = vld [vmem:[#allocation2 + $0x78] sm:$0xf]
    %v164 = vld [vmem:[#allocation2 + $0x7c] sm:$0xf]
    %v165 = vld [vmem:[#allocation2 + $0x80] sm:$0xf]
    %v166 = vld [vmem:[#allocation2 + $0x84] sm:$0xf]
    %v167 = vld [vmem:[#allocation2 + $0x88] sm:$0xf]
    %v168 = vld [vmem:[#allocation2 + $0x8c] sm:$0xf]
    %v169 = vld [vmem:[#allocation2 + $0x90] sm:$0xf]
    %v170 = vld [vmem:[#allocation2 + $0x94] sm:$0xf]
    %v171 = vld [vmem:[#allocation2 + $0x98] sm:$0xf]
    %v172 = vld [vmem:[#allocation2 + $0x9c] sm:$0xf]
    %v173 = vld [vmem:[#allocation2 + $0xa0] sm:$0xf]
    %v174 = vld [vmem:[#allocation2 + $0xa4] sm:$0xf]
    %v175 = vld [vmem:[#allocation2 + $0xa8] sm:$0xf]
    %v176 = vld [vmem:[#allocation2 + $0xac] sm:$0xf]
    %v177 = vld [vmem:[#allocation2 + $0xb0] sm:$0xf]
    %v178 = vld [vmem:[#allocation2 + $0xb4] sm:$0xf]
    %v179 = vld [vmem:[#allocation2 + $0xb8] sm:$0xf]
    %v180 = vld [vmem:[#allocation2 + $0xbc] sm:$0xf]
    %v181 = vld [vmem:[#allocation2 + $0xc0] sm:$0xf]
    %v182 = vld [vmem:[#allocation2 + $0xc4] sm:$0xf]
    %v183 = vld [vmem:[#allocation2 + $0xc8] sm:$0xf]
    %v184 = vld [vmem:[#allocation2 + $0xcc] sm:$0xf]
    %v185 = vld [vmem:[#allocation2 + $0xd0] sm:$0xf]
    %v186 = vld [vmem:[#allocation2 + $0xd4] sm:$0xf]
    %v187 = vld [vmem:[#allocation2 + $0xd8] sm:$0xf]
    %v188 = vld [vmem:[#allocation2 + $0xdc] sm:$0xf]
    %v189 = vld [vmem:[#allocation2 + $0xe0] sm:$0xf]
    %v190 = vld [vmem:[#allocation2 + $0xe4] sm:$0xf]
    %v191 = vld [vmem:[#allocation2 + $0xe8] sm:$0xf]
    %v192 = vld [vmem:[#allocation2 + $0xec] sm:$0xf]
    %v193 = vld [vmem:[#allocation2 + $0xf0] sm:$0xf]
    %v194 = vld [vmem:[#allocation2 + $0xf4] sm:$0xf]
    %v195 = vld [vmem:[#allocation2 + $0xf8] sm:$0xf]
    %v196 = vld [vmem:[#allocation2 + $0xfc] sm:$0xf]
    %v197 = vld [vmem:[#allocation2 + $0x100] sm:$0xf]
    %v198 = vld [vmem:[#allocation2 + $0x104] sm:$0xf]
    %v199 = vld [vmem:[#allocation2 + $0x108] sm:$0xf]
    %v200 = vld [vmem:[#allocation2 + $0x10c] sm:$0xf]
    %v201 = vld [vmem:[#allocation2 + $0x110] sm:$0xf]
    %v202 = vld [vmem:[#allocation2 + $0x114] sm:$0xf]
    %v203 = vld [vmem:[#allocation2 + $0x118] sm:$0xf]
    %v204 = vld [vmem:[#allocation2 + $0x11c] sm:$0xf]
    %v205 = vld [vmem:[#allocation2 + $0x120] sm:$0xf]
    %v206 = vld [vmem:[#allocation2 + $0x124] sm:$0xf]
    %v207 = vld [vmem:[#allocation2 + $0x128] sm:$0xf]
    %v208 = vld [vmem:[#allocation2 + $0x12c] sm:$0xf]
    %v209 = vld [vmem:[#allocation2 + $0x130] sm:$0xf]
    %v210 = vld [vmem:[#allocation2 + $0x134] sm:$0xf]
    %v211 = vld [vmem:[#allocation2 + $0x138] sm:$0xf]
    %v212 = vld [vmem:[#allocation2 + $0x13c] sm:$0xf]
    %v213 = vld [vmem:[#allocation2 + $0x140] sm:$0xf]
    %v214 = vld [vmem:[#allocation2 + $0x144] sm:$0xf]
    %v215 = vld [vmem:[#allocation2 + $0x148] sm:$0xf]
    %v216 = vld [vmem:[#allocation2 + $0x14c] sm:$0xf]
    %v217 = vld [vmem:[#allocation2 + $0x150] sm:$0xf]
    %v218 = vld [vmem:[#allocation2 + $0x154] sm:$0xf]
    %v219 = vld [vmem:[#allocation2 + $0x158] sm:$0xf]
    %v220 = vld [vmem:[#allocation2 + $0x15c] sm:$0xf]
    %v221 = vld [vmem:[#allocation2 + $0x160] sm:$0xf]
    %v222 = vld [vmem:[#allocation2 + $0x164] sm:$0xf]
    %v223 = vld [vmem:[#allocation2 + $0x168] sm:$0xf]
    %v224 = vld [vmem:[#allocation2 + $0x16c] sm:$0xf]
    %v225 = vld [vmem:[#allocation2 + $0x170] sm:$0xf]
    %v226 = vld [vmem:[#allocation2 + $0x174] sm:$0xf]
    %v227 = vld [vmem:[#allocation2 + $0x178] sm:$0xf]
    %v228 = vld [vmem:[#allocation2 + $0x17c] sm:$0xf]
    %v229 = vld [vmem:[#allocation2 + $0x180] sm:$0xf]
    %v230 = vld [vmem:[#allocation2 + $0x184] sm:$0xf]
    %v231 = vld [vmem:[#allocation2 + $0x188] sm:$0xf]
    %v232 = vld [vmem:[#allocation2 + $0x18c] sm:$0xf]
    %v233 = vld [vmem:[#allocation2 + $0x190] sm:$0xf]
    %v234 = vld [vmem:[#allocation2 + $0x194] sm:$0xf]
    %v235 = vld [vmem:[#allocation2 + $0x198] sm:$0xf]
    %v236 = vld [vmem:[#allocation2 + $0x19c] sm:$0xf]
    %v237 = vld [vmem:[#allocation2 + $0x1a0] sm:$0xf]
    %v238 = vld [vmem:[#allocation2 + $0x1a4] sm:$0xf]
    %v239 = vld [vmem:[#allocation2 + $0x1a8] sm:$0xf]
    %v240 = vld [vmem:[#allocation2 + $0x1ac] sm:$0xf]
    %v241 = vld [vmem:[#allocation2 + $0x1b0] sm:$0xf]
    %v242 = vld [vmem:[#allocation2 + $0x1b4] sm:$0xf]
    %v243 = vld [vmem:[#allocation2 + $0x1b8] sm:$0xf]
    %v244 = vld [vmem:[#allocation2 + $0x1bc] sm:$0xf]
    %v245 = vld [vmem:[#allocation2 + $0x1c0] sm:$0xf]
    %v246 = vld [vmem:[#allocation2 + $0x1c4] sm:$0xf]
    %v247 = vld [vmem:[#allocation2 + $0x1c8] sm:$0xf]
    %v248 = vld [vmem:[#allocation2 + $0x1cc] sm:$0xf]
    %v249 = vld [vmem:[#allocation2 + $0x1d0] sm:$0xf]
    %v250 = vld [vmem:[#allocation2 + $0x1d4] sm:$0xf]
    %v251 = vld [vmem:[#allocation2 + $0x1d8] sm:$0xf]
    %v252 = vld [vmem:[#allocation2 + $0x1dc] sm:$0xf]
    %v253 = vld [vmem:[#allocation2 + $0x1e0] sm:$0xf]
    %v254 = vld [vmem:[#allocation2 + $0x1e4] sm:$0xf]
    %v255 = vld [vmem:[#allocation2 + $0x1e8] sm:$0xf]
    %v256 = vld [vmem:[#allocation2 + $0x1ec] sm:$0xf]
    %v257 = vld [vmem:[#allocation2 + $0x1f0] sm:$0xf]
    %v258 = vld [vmem:[#allocation2 + $0x1f4] sm:$0xf]
    %v259 = vld [vmem:[#allocation2 + $0x1f8] sm:$0xf]
    %v260 = vld [vmem:[#allocation2 + $0x1fc] sm:$0xf]
    %v261 = vld [vmem:[%s2] sm:$0x1]
    %v263 = vlaneseq
    %v264 = vshrl.u32 %v263, 7
    %v265 = vsub.s32 0, %v264
    %v266 = vrot.slane %v261, %v265
    %v396 = vunpack.c.l.b16 %v133
    %v397 = vunpack.c.l.b16 %v134
    %v398 = vunpack.c.l.b16 %v135
    %v399 = vunpack.c.l.b16 %v136
    %v400 = vunpack.c.l.b16 %v137
    %v401 = vunpack.c.l.b16 %v138
    %v402 = vunpack.c.l.b16 %v139
    %v403 = vunpack.c.l.b16 %v140
    %v404 = vunpack.c.l.b16 %v141
    %v405 = vunpack.c.l.b16 %v142
    %v406 = vunpack.c.l.b16 %v143
    %v407 = vunpack.c.l.b16 %v144
    %v408 = vunpack.c.l.b16 %v145
    %v409 = vunpack.c.l.b16 %v146
    %v410 = vunpack.c.l.b16 %v147
    %v411 = vunpack.c.l.b16 %v148
    %v412 = vunpack.c.l.b16 %v149
    %v413 = vunpack.c.l.b16 %v150
    %v414 = vunpack.c.l.b16 %v151
    %v415 = vunpack.c.l.b16 %v152
    %v416 = vunpack.c.l.b16 %v153
    %v417 = vunpack.c.l.b16 %v154
    %v418 = vunpack.c.l.b16 %v155
    %v419 = vunpack.c.l.b16 %v156
    %v420 = vunpack.c.l.b16 %v157
    %v421 = vunpack.c.l.b16 %v158
    %v422 = vunpack.c.l.b16 %v159
    %v423 = vunpack.c.l.b16 %v160
    %v424 = vunpack.c.l.b16 %v161
    %v425 = vunpack.c.l.b16 %v162
    %v426 = vunpack.c.l.b16 %v163
    %v427 = vunpack.c.l.b16 %v164
    %v428 = vunpack.c.l.b16 %v165
    %v429 = vunpack.c.l.b16 %v166
    %v430 = vunpack.c.l.b16 %v167
    %v431 = vunpack.c.l.b16 %v168
    %v432 = vunpack.c.l.b16 %v169
    %v433 = vunpack.c.l.b16 %v170
    %v434 = vunpack.c.l.b16 %v171
    %v435 = vunpack.c.l.b16 %v172
    %v436 = vunpack.c.l.b16 %v173
    %v437 = vunpack.c.l.b16 %v174
    %v438 = vunpack.c.l.b16 %v175
    %v439 = vunpack.c.l.b16 %v176
    %v440 = vunpack.c.l.b16 %v177
    %v441 = vunpack.c.l.b16 %v178
    %v442 = vunpack.c.l.b16 %v179
    %v443 = vunpack.c.l.b16 %v180
    %v444 = vunpack.c.l.b16 %v181
    %v445 = vunpack.c.l.b16 %v182
    %v446 = vunpack.c.l.b16 %v183
    %v447 = vunpack.c.l.b16 %v184
    %v448 = vunpack.c.l.b16 %v185
    %v449 = vunpack.c.l.b16 %v186
    %v450 = vunpack.c.l.b16 %v187
    %v451 = vunpack.c.l.b16 %v188
    %v452 = vunpack.c.l.b16 %v189
    %v453 = vunpack.c.l.b16 %v190
    %v454 = vunpack.c.l.b16 %v191
    %v455 = vunpack.c.l.b16 %v192
    %v456 = vunpack.c.l.b16 %v193
    %v457 = vunpack.c.l.b16 %v194
    %v458 = vunpack.c.l.b16 %v195
    %v459 = vunpack.c.l.b16 %v196
    %v460 = vunpack.c.l.b16 %v197
    %v461 = vunpack.c.l.b16 %v198
    %v462 = vunpack.c.l.b16 %v199
    %v463 = vunpack.c.l.b16 %v200
    %v464 = vunpack.c.l.b16 %v201
    %v465 = vunpack.c.l.b16 %v202
    %v466 = vunpack.c.l.b16 %v203
    %v467 = vunpack.c.l.b16 %v204
    %v468 = vunpack.c.l.b16 %v205
    %v469 = vunpack.c.l.b16 %v206
    %v470 = vunpack.c.l.b16 %v207
    %v471 = vunpack.c.l.b16 %v208
    %v472 = vunpack.c.l.b16 %v209
    %v473 = vunpack.c.l.b16 %v210
    %v474 = vunpack.c.l.b16 %v211
    %v475 = vunpack.c.l.b16 %v212
    %v476 = vunpack.c.l.b16 %v213
    %v477 = vunpack.c.l.b16 %v214
    %v478 = vunpack.c.l.b16 %v215
    %v479 = vunpack.c.l.b16 %v216
    %v480 = vunpack.c.l.b16 %v217
    %v481 = vunpack.c.l.b16 %v218
    %v482 = vunpack.c.l.b16 %v219
    %v483 = vunpack.c.l.b16 %v220
    %v484 = vunpack.c.l.b16 %v221
    %v485 = vunpack.c.l.b16 %v222
    %v486 = vunpack.c.l.b16 %v223
    %v487 = vunpack.c.l.b16 %v224
    %v488 = vunpack.c.l.b16 %v225
    %v489 = vunpack.c.l.b16 %v226
    %v490 = vunpack.c.l.b16 %v227
    %v491 = vunpack.c.l.b16 %v228
    %v492 = vunpack.c.l.b16 %v229
    %v493 = vunpack.c.l.b16 %v230
    %v494 = vunpack.c.l.b16 %v231
    %v495 = vunpack.c.l.b16 %v232
    %v496 = vunpack.c.l.b16 %v233
    %v497 = vunpack.c.l.b16 %v234
    %v498 = vunpack.c.l.b16 %v235
    %v499 = vunpack.c.l.b16 %v236
    %v500 = vunpack.c.l.b16 %v237
    %v501 = vunpack.c.l.b16 %v238
    %v502 = vunpack.c.l.b16 %v239
    %v503 = vunpack.c.l.b16 %v240
    %v504 = vunpack.c.l.b16 %v241
    %v505 = vunpack.c.l.b16 %v242
    %v506 = vunpack.c.l.b16 %v243
    %v507 = vunpack.c.l.b16 %v244
    %v508 = vunpack.c.l.b16 %v245
    %v509 = vunpack.c.l.b16 %v246
    %v510 = vunpack.c.l.b16 %v247
    %v511 = vunpack.c.l.b16 %v248
    %v512 = vunpack.c.l.b16 %v249
    %v513 = vunpack.c.l.b16 %v250
    %v514 = vunpack.c.l.b16 %v251
    %v515 = vunpack.c.l.b16 %v252
    %v516 = vunpack.c.l.b16 %v253
    %v517 = vunpack.c.l.b16 %v254
    %v518 = vunpack.c.l.b16 %v255
    %v519 = vunpack.c.l.b16 %v256
    %v520 = vunpack.c.l.b16 %v257
    %v521 = vunpack.c.l.b16 %v258
    %v522 = vunpack.c.l.b16 %v259
    %v523 = vunpack.c.l.b16 %v260
    %v524 = vpack.c.b16 %v397, %v396
    %v525 = vpack.c.b16 %v399, %v398
    %v526 = vpack.c.b16 %v401, %v400
    %v527 = vpack.c.b16 %v403, %v402
    %v528 = vpack.c.b16 %v405, %v404
    %v529 = vpack.c.b16 %v407, %v406
    %v530 = vpack.c.b16 %v409, %v408
    %v531 = vpack.c.b16 %v411, %v410
    %v532 = vpack.c.b16 %v413, %v412
    %v533 = vpack.c.b16 %v415, %v414
    %v534 = vpack.c.b16 %v417, %v416
    %v535 = vpack.c.b16 %v419, %v418
    %v536 = vpack.c.b16 %v421, %v420
    %v537 = vpack.c.b16 %v423, %v422
    %v538 = vpack.c.b16 %v425, %v424
    %v539 = vpack.c.b16 %v427, %v426
    %v540 = vpack.c.b16 %v429, %v428
    %v541 = vpack.c.b16 %v431, %v430
    %v542 = vpack.c.b16 %v433, %v432
    %v543 = vpack.c.b16 %v435, %v434
    %v544 = vpack.c.b16 %v437, %v436
    %v545 = vpack.c.b16 %v439, %v438
    %v546 = vpack.c.b16 %v441, %v440
    %v547 = vpack.c.b16 %v443, %v442
    %v548 = vpack.c.b16 %v445, %v444
    %v549 = vpack.c.b16 %v447, %v446
    %v550 = vpack.c.b16 %v449, %v448
    %v551 = vpack.c.b16 %v451, %v450
    %v552 = vpack.c.b16 %v453, %v452
    %v553 = vpack.c.b16 %v455, %v454
    %v554 = vpack.c.b16 %v457, %v456
    %v555 = vpack.c.b16 %v459, %v458
    %v556 = vpack.c.b16 %v461, %v460
    %v557 = vpack.c.b16 %v463, %v462
    %v558 = vpack.c.b16 %v465, %v464
    %v559 = vpack.c.b16 %v467, %v466
    %v560 = vpack.c.b16 %v469, %v468
    %v561 = vpack.c.b16 %v471, %v470
    %v562 = vpack.c.b16 %v473, %v472
    %v563 = vpack.c.b16 %v475, %v474
    %v564 = vpack.c.b16 %v477, %v476
    %v565 = vpack.c.b16 %v479, %v478
    %v566 = vpack.c.b16 %v481, %v480
    %v567 = vpack.c.b16 %v483, %v482
    %v568 = vpack.c.b16 %v485, %v484
    %v569 = vpack.c.b16 %v487, %v486
    %v570 = vpack.c.b16 %v489, %v488
    %v571 = vpack.c.b16 %v491, %v490
    %v572 = vpack.c.b16 %v493, %v492
    %v573 = vpack.c.b16 %v495, %v494
    %v574 = vpack.c.b16 %v497, %v496
    %v575 = vpack.c.b16 %v499, %v498
    %v576 = vpack.c.b16 %v501, %v500
    %v577 = vpack.c.b16 %v503, %v502
    %v578 = vpack.c.b16 %v505, %v504
    %v579 = vpack.c.b16 %v507, %v506
    %v580 = vpack.c.b16 %v509, %v508
    %v581 = vpack.c.b16 %v511, %v510
    %v582 = vpack.c.b16 %v513, %v512
    %v583 = vpack.c.b16 %v515, %v514
    %v584 = vpack.c.b16 %v517, %v516
    %v585 = vpack.c.b16 %v519, %v518
    %v586 = vpack.c.b16 %v521, %v520
    %v587 = vpack.c.b16 %v523, %v522
    %652 = vmatprep.subr.bf16.mxu0 0
    %653 = vmatpush1.bf16.msra.mxu0 %v531
    %654 = vmatprep.subr.bf16.mxu0 0
    %655 = vmatpush1.bf16.msra.mxu0 %v530
    %656 = vmatprep.subr.bf16.mxu0 0
    %657 = vmatpush1.bf16.msra.mxu0 %v529
    %658 = vmatprep.subr.bf16.mxu0 0
    %659 = vmatpush1.bf16.msra.mxu0 %v528
    %660 = vmatprep.subr.bf16.mxu0 0
    %661 = vmatpush1.bf16.msra.mxu0 %v527
    %662 = vmatprep.subr.bf16.mxu0 0
    %663 = vmatpush1.bf16.msra.mxu0 %v526
    %664 = vmatprep.subr.bf16.mxu0 0
    %665 = vmatpush1.bf16.msra.mxu0 %v525
    %666 = vmatprep.subr.bf16.mxu0 0
    %667 = vmatpush1.bf16.msra.mxu0 %v524
    %668 = vmatprep.subr.bf16.mxu0 0
    %669 = vmatpush2.bf16.msra.mxu0 %v539
    %670 = vmatprep.subr.bf16.mxu0 0
    %671 = vmatpush2.bf16.msra.mxu0 %v538
    %672 = vmatprep.subr.bf16.mxu0 0
    %673 = vmatpush2.bf16.msra.mxu0 %v537
    %674 = vmatprep.subr.bf16.mxu0 0
    %675 = vmatpush2.bf16.msra.mxu0 %v536
    %676 = vmatprep.subr.bf16.mxu0 0
    %677 = vmatpush2.bf16.msra.mxu0 %v535
    %678 = vmatprep.subr.bf16.mxu0 0
    %679 = vmatpush2.bf16.msra.mxu0 %v534
    %680 = vmatprep.subr.bf16.mxu0 0
    %681 = vmatpush2.bf16.msra.mxu0 %v533
    %682 = vmatprep.subr.bf16.mxu0 0
    %683 = vmatpush2.bf16.msra.mxu0 %v532
    %684 = vmatprep.mubr.bf16.mxu0 %v126
    %685 = vmatmul.mubr.bf16.gmra.mxu0 %v125
    %v686 = vpop.f32.mrf.mxu0
    %v687 = vadd.f32 %v266, %v686
    %v688 = vpop.f32.mrf.mxu0
    %v689 = vpop.f32.mrf.mxu0
    %v690 = vpop.f32.mrf.mxu0
    %691 = vdwg.mxu0
    %692 = vmatprep.subr.bf16.mxu0 0
    %693 = vmatpush1.bf16.msra.mxu0 %v547
    %694 = vmatprep.subr.bf16.mxu0 0
    %695 = vmatpush1.bf16.msra.mxu0 %v546
    %696 = vmatprep.subr.bf16.mxu0 0
    %697 = vmatpush1.bf16.msra.mxu0 %v545
    %698 = vmatprep.subr.bf16.mxu0 0
    %699 = vmatpush1.bf16.msra.mxu0 %v544
    %700 = vmatprep.subr.bf16.mxu0 0
    %701 = vmatpush1.bf16.msra.mxu0 %v543
    %702 = vmatprep.subr.bf16.mxu0 0
    %703 = vmatpush1.bf16.msra.mxu0 %v542
    %704 = vmatprep.subr.bf16.mxu0 0
    %705 = vmatpush1.bf16.msra.mxu0 %v541
    %706 = vmatprep.subr.bf16.mxu0 0
    %707 = vmatpush1.bf16.msra.mxu0 %v540
    %708 = vmatprep.subr.bf16.mxu0 0
    %709 = vmatpush2.bf16.msra.mxu0 %v555
    %710 = vmatprep.subr.bf16.mxu0 0
    %711 = vmatpush2.bf16.msra.mxu0 %v554
    %712 = vmatprep.subr.bf16.mxu0 0
    %713 = vmatpush2.bf16.msra.mxu0 %v553
    %714 = vmatprep.subr.bf16.mxu0 0
    %715 = vmatpush2.bf16.msra.mxu0 %v552
    %716 = vmatprep.subr.bf16.mxu0 0
    %717 = vmatpush2.bf16.msra.mxu0 %v551
    %718 = vmatprep.subr.bf16.mxu0 0
    %719 = vmatpush2.bf16.msra.mxu0 %v550
    %720 = vmatprep.subr.bf16.mxu0 0
    %721 = vmatpush2.bf16.msra.mxu0 %v549
    %722 = vmatprep.subr.bf16.mxu0 0
    %723 = vmatpush2.bf16.msra.mxu0 %v548
    %724 = vmatprep.mubr.bf16.mxu0 %v128
    %725 = vmatmul.mubr.bf16.gmra.mxu0 %v127
    %v726 = vpop.f32.mrf.mxu0
    %v727 = vadd.f32 %v687, %v726
    %v728 = vpop.f32.mrf.mxu0
    %v729 = vpop.f32.mrf.mxu0
    %v730 = vpop.f32.mrf.mxu0
    %731 = vdwg.mxu0
    %732 = vmatprep.subr.bf16.mxu0 0
    %733 = vmatpush1.bf16.msra.mxu0 %v563
    %734 = vmatprep.subr.bf16.mxu0 0
    %735 = vmatpush1.bf16.msra.mxu0 %v562
    %736 = vmatprep.subr.bf16.mxu0 0
    %737 = vmatpush1.bf16.msra.mxu0 %v561
    %738 = vmatprep.subr.bf16.mxu0 0
    %739 = vmatpush1.bf16.msra.mxu0 %v560
    %740 = vmatprep.subr.bf16.mxu0 0
    %741 = vmatpush1.bf16.msra.mxu0 %v559
    %742 = vmatprep.subr.bf16.mxu0 0
    %743 = vmatpush1.bf16.msra.mxu0 %v558
    %744 = vmatprep.subr.bf16.mxu0 0
    %745 = vmatpush1.bf16.msra.mxu0 %v557
    %746 = vmatprep.subr.bf16.mxu0 0
    %747 = vmatpush1.bf16.msra.mxu0 %v556
    %748 = vmatprep.subr.bf16.mxu0 0
    %749 = vmatpush2.bf16.msra.mxu0 %v571
    %750 = vmatprep.subr.bf16.mxu0 0
    %751 = vmatpush2.bf16.msra.mxu0 %v570
    %752 = vmatprep.subr.bf16.mxu0 0
    %753 = vmatpush2.bf16.msra.mxu0 %v569
    %754 = vmatprep.subr.bf16.mxu0 0
    %755 = vmatpush2.bf16.msra.mxu0 %v568
    %756 = vmatprep.subr.bf16.mxu0 0
    %757 = vmatpush2.bf16.msra.mxu0 %v567
    %758 = vmatprep.subr.bf16.mxu0 0
    %759 = vmatpush2.bf16.msra.mxu0 %v566
    %760 = vmatprep.subr.bf16.mxu0 0
    %761 = vmatpush2.bf16.msra.mxu0 %v565
    %762 = vmatprep.subr.bf16.mxu0 0
    %763 = vmatpush2.bf16.msra.mxu0 %v564
    %764 = vmatprep.mubr.bf16.mxu0 %v130
    %765 = vmatmul.mubr.bf16.gmra.mxu0 %v129
    %v766 = vpop.f32.mrf.mxu0
    %v767 = vadd.f32 %v727, %v766
    %v768 = vpop.f32.mrf.mxu0
    %v769 = vpop.f32.mrf.mxu0
    %v770 = vpop.f32.mrf.mxu0
    %771 = vdwg.mxu0
    %772 = vmatprep.subr.bf16.mxu0 0
    %773 = vmatpush1.bf16.msra.mxu0 %v579
    %774 = vmatprep.subr.bf16.mxu0 0
    %775 = vmatpush1.bf16.msra.mxu0 %v578
    %776 = vmatprep.subr.bf16.mxu0 0
    %777 = vmatpush1.bf16.msra.mxu0 %v577
    %778 = vmatprep.subr.bf16.mxu0 0
    %779 = vmatpush1.bf16.msra.mxu0 %v576
    %780 = vmatprep.subr.bf16.mxu0 0
    %781 = vmatpush1.bf16.msra.mxu0 %v575
    %782 = vmatprep.subr.bf16.mxu0 0
    %783 = vmatpush1.bf16.msra.mxu0 %v574
    %784 = vmatprep.subr.bf16.mxu0 0
    %785 = vmatpush1.bf16.msra.mxu0 %v573
    %786 = vmatprep.subr.bf16.mxu0 0
    %787 = vmatpush1.bf16.msra.mxu0 %v572
    %788 = vmatprep.subr.bf16.mxu0 0
    %789 = vmatpush2.bf16.msra.mxu0 %v587
    %790 = vmatprep.subr.bf16.mxu0 0
    %791 = vmatpush2.bf16.msra.mxu0 %v586
    %792 = vmatprep.subr.bf16.mxu0 0
    %793 = vmatpush2.bf16.msra.mxu0 %v585
    %794 = vmatprep.subr.bf16.mxu0 0
    %795 = vmatpush2.bf16.msra.mxu0 %v584
    %796 = vmatprep.subr.bf16.mxu0 0
    %797 = vmatpush2.bf16.msra.mxu0 %v583
    %798 = vmatprep.subr.bf16.mxu0 0
    %799 = vmatpush2.bf16.msra.mxu0 %v582
    %800 = vmatprep.subr.bf16.mxu0 0
    %801 = vmatpush2.bf16.msra.mxu0 %v581
    %802 = vmatprep.subr.bf16.mxu0 0
    %803 = vmatpush2.bf16.msra.mxu0 %v580
    %804 = vmatprep.mubr.bf16.mxu0 %v132
    %805 = vmatmul.mubr.bf16.gmra.mxu0 %v131
    %v806 = vpop.f32.mrf.mxu0
    %v807 = vadd.f32 %v767, %v806
    %v808 = vpop.f32.mrf.mxu0
    %v809 = vpop.f32.mrf.mxu0
    %v810 = vpop.f32.mrf.mxu0
    %811 = vdwg.mxu0
    %v812 = vpack.c.bf16 %v807, %v807
    %v815 = vunpack.c.l.s4 1966171168
    %v816 = vunpack.c.0.s8 %v815
    %v817 = vlaneseq
    %v818 = vshrl.u32 %v817, 7
    %v819 = vsub.s32 %v816, %v818
    %v820 = vrot.slane %v812, %v819
    %v821 = vcombine.high %v820, %v820
    %v823 = vunpack.c.l.s4 1966171168
    %v824 = vunpack.c.0.s8 %v823
    %v825 = vlaneseq
    %v826 = vshrl.u32 %v825, 7
    %v827 = vsub.s32 %v824, %v826
    %v828 = vrot.slane %v820, %v827
    %v830 = vunpack.c.l.s4 1966171168
    %v831 = vunpack.c.0.s8 %v830
    %v832 = vlaneseq
    %v833 = vshrl.u32 %v832, 7
    %v834 = vsub.s32 %v831, %v833
    %v835 = vrot.slane %v821, %v834
    %v836 = vcombine.high %v828, %v828
    %v837 = vcombine.high %v835, %v835
    %842 = vst [vmem:[#allocation4] sm:$0x1] %v828
    %843 = vst [vmem:[#allocation4 + $0x1] sm:$0x1] %v835
    %844 = vst [vmem:[#allocation4 + $0x2] sm:$0x1] %v836
    %845 = vst [vmem:[#allocation4 + $0x3] sm:$0x1] %v837
    // Predicated region
    $region18: #{logistic_regression_forward.1} parent=1 // pred_check
      _
    $region19: #{logistic_regression_forward.1} parent=1 // pred_check_branch
      %847 = sbr.rel (0) target = $region21
    $region20: #{logistic_regression_forward.1} parent=1 // pred_region
      // Predicated region
      $region22: #{logistic_regression_forward.1} parent=20 // pred_check
        _
      $region23: #{logistic_regression_forward.1} parent=20 // pred_check_branch
        %849 = sbr.rel (0) target = $region25
      $region24: #{logistic_regression_forward.1} parent=20 // pred_region
        // Predicated region
        $region26: #{logistic_regression_forward.1} parent=24 // pred_check
          _
        $region27: #{logistic_regression_forward.1} parent=24 // pred_check_branch
          %851 = sbr.rel target = $region29
        $region28: #{logistic_regression_forward.1} parent=24 // pred_region
          // Predicated region
          $region41: #{logistic_regression_forward.1} parent=28 // pred_check
            _
          $region42: #{logistic_regression_forward.1} parent=28 // pred_check_branch
            %867 = sbr.rel (0) target = $region44
          $region43: #{logistic_regression_forward.1} parent=28 // pred_region
            %s869 = ssub.s32 2, 1
            loop: start=0, step=1, limit=1
            $region45: #{logistic_regression_forward.1} parent=43 // loop_pre_header
              _
            $region46: #{logistic_regression_forward.1} parent=43 // loop_header
              %s871 = sphi 0, %s875
              %p872 = scmp.ge.s32.totalorder %s871, 1
              %s876 = sphi [#allocation4], [#allocation4]
              %s877 = sphi %s3, %s3
            $region47: #{logistic_regression_forward.1} parent=43 // loop_header_branch
              %874 = sbr.rel (%p872) target = $region51
            $region48: #{logistic_regression_forward.1} parent=43 // loop_body
              %v878 = vld [vmem:[%s876] sm:%s869]
              %879 = vst [vmem:[%s877] sm:%s869] %v878
            $region49: #{logistic_regression_forward.1} parent=43 // loop_footer
              %s875 = sadd.s32 1, %s871
            $region50: #{logistic_regression_forward.1} parent=43 // loop_footer_branch
              %870 = sbr.rel target = $region46
            $region51: #{logistic_regression_forward.1} parent=43 // loop_exit
              _
          $region44: #{logistic_regression_forward.1} parent=28 // pred_fallthru
            _
        $region29: #{logistic_regression_forward.1} parent=24 // pred_fallthru
          _
        // Predicated region
        $region30: #{logistic_regression_forward.1} parent=24 // pred_check
          _
        $region31: #{logistic_regression_forward.1} parent=24 // pred_check_branch
          %853 = sbr.rel (0) target = $region33
        $region32: #{logistic_regression_forward.1} parent=24 // pred_region
          %s855 = ssub.s32 2, 1
          loop: start=0, step=1, limit=1
          $region34: #{logistic_regression_forward.1} parent=32 // loop_pre_header
            _
          $region35: #{logistic_regression_forward.1} parent=32 // loop_header
            %s857 = sphi 0, %s861
            %p858 = scmp.ge.s32.totalorder %s857, 1
            %s862 = sphi [#allocation4], [#allocation4]
            %s863 = sphi %s3, %s3
          $region36: #{logistic_regression_forward.1} parent=32 // loop_header_branch
            %860 = sbr.rel (%p858) target = $region40
          $region37: #{logistic_regression_forward.1} parent=32 // loop_body
            %v864 = vld [vmem:[%s862] sm:%s855]
            %865 = vst [vmem:[%s863] sm:%s855] %v864
          $region38: #{logistic_regression_forward.1} parent=32 // loop_footer
            %s861 = sadd.s32 1, %s857
          $region39: #{logistic_regression_forward.1} parent=32 // loop_footer_branch
            %856 = sbr.rel target = $region35
          $region40: #{logistic_regression_forward.1} parent=32 // loop_exit
            _
        $region33: #{logistic_regression_forward.1} parent=24 // pred_fallthru
          _
      $region25: #{logistic_regression_forward.1} parent=20 // pred_fallthru
        _
      %880 = vnop
    $region21: #{logistic_regression_forward.1} parent=1 // pred_fallthru
      _
    // Predicated region
    $region52: #{logistic_regression_forward.1} parent=1 // pred_check
      _
    $region53: #{logistic_regression_forward.1} parent=1 // pred_check_branch
      %882 = sbr.rel (0) target = $region55
    $region54: #{logistic_regression_forward.1} parent=1 // pred_region
      _
    $region55: #{logistic_regression_forward.1} parent=1 // pred_fallthru
      _
    %883 = vsyncpa [#allocation3], 1

</llo_original>
